<compile_context>
chip_gen: v6e
topology: v6e:2x2x1
jax: 0.10.0
libtpu: 0.0.40
codegen_flags: <defaults>
</compile_context>

<pallas_src>
import functools

import jax
import jax.numpy as jnp
from jax.experimental import pallas as pl
from jax.experimental.pallas import tpu as pltpu


# Widest-first lane candidates; all multiples of 128 (vreg lane width).
_LANE_CANDIDATES = (2048, 1024, 512, 256, 128)

_TINY_BYTES = 512 * 1024          # below this: single block, no pipeline
_MIN_PIPELINE_STEPS = 4           # above _TINY_BYTES: at least this many steps


def _tpu_generation():
    """Best-effort TPU generation from device_kind ('TPU v5 lite' -> 5, ...)."""
    try:
        kind = jax.devices()[0].device_kind.lower()
    except Exception:  # pragma: no cover - non-TPU / query failure
        return None
    for marker, gen in (("v7", 7), ("7x", 7), ("v6", 6), ("v5", 5), ("v4", 4)):
        if marker in kind:
            return gen
    return None


def _sublane_multiple(dtype):
    """Sublane packing of one vreg for this dtype (8 x 32-bit base)."""
    itemsize = jnp.dtype(dtype).itemsize
    return {4: 8, 2: 16, 1: 32}.get(itemsize, 8)


def _make_kernel(scale, compute_dtype):
    scale = float(scale)  # compile-time constant baked into the kernel

    def kernel(x_ref, o_ref):
        # Python-float scale / 0.0 are weakly typed -> stay in compute_dtype.
        x = x_ref[...].astype(compute_dtype)
        o_ref[...] = jnp.maximum(x * scale, 0.0).astype(o_ref.dtype)

    return kernel


@functools.partial(
    jax.jit, static_argnames=("scale", "block_bytes", "block_rows", "max_lane")
)
def scaled_relu(x, scale, *, block_bytes=None, block_rows=None, max_lane=2048):
    """relu(x * scale), elementwise, any shape / float dtype."""
    orig_shape = x.shape
    dtype = x.dtype
    n = x.size
    if n == 0:
        return x

    gen = _tpu_generation()

    # --- Per-generation defaults (review: bigger blocks + VMEM only on v7x).
    if block_bytes is None:
        block_bytes = 8 * 1024 * 1024 if gen == 7 else 4 * 1024 * 1024
    vmem_limit = 48 * 1024 * 1024 if gen == 7 else 32 * 1024 * 1024

    # --- Compute dtype: native bf16 on v6e/v7x (bf16 VALU); promote to f32
    # --- on v5e / unknown chips (no bf16 VPU there).
    if dtype == jnp.bfloat16 and gen is not None and gen >= 6:
        compute_dtype = jnp.bfloat16
    else:
        compute_dtype = jnp.float32

    itemsize = jnp.dtype(dtype).itemsize
    sub = _sublane_multiple(dtype)
    scale_f = float(scale)

    # --- Split off the <128-element ragged tail instead of padding the whole
    # --- array (no pad/slice round trip of the full tensor).
    x_flat = jnp.reshape(x, (-1,))
    n_main = (n // 128) * 128
    tail_len = n - n_main

    if n_main == 0:
        # Entire input is smaller than one lane row: plain jnp, no kernel.
        y = jnp.maximum(x_flat.astype(compute_dtype) * scale_f, 0.0).astype(dtype)
        return y.reshape(orig_shape)

    x_main = x_flat if tail_len == 0 else x_flat[:n_main]

    # --- Lane-dense 2D view of the aligned prefix: unmasked full-lane stores.
    lane = next(
        (l for l in _LANE_CANDIDATES if l <= max_lane and n_main % l == 0), 128
    )
    rows = n_main // lane
    x2d = x_main.reshape(rows, lane)

    # --- Block sizing.
    total_bytes = n_main * itemsize
    if block_rows is None:
        if total_bytes <= _TINY_BYTES:
            br = rows  # tiny: single full-array block, no pipeline overhead
        else:
            # Target multi-MiB blocks, but keep >= ~4 grid steps so the
            # input/output DMAs actually overlap with compute.
            target = max(sub, (block_bytes // (lane * itemsize)) // sub * sub)
            quarter = max(
                sub, pl.cdiv(pl.cdiv(rows, _MIN_PIPELINE_STEPS), sub) * sub
            )
            br = min(target, quarter)
    else:
        # Round user-supplied block_rows to the sublane packing multiple.
        br = max(sub, (int(block_rows) // sub) * sub)
    # block_rows == rows (full dim) is always legal, so clamp last.
    block_rows_eff = min(max(sub, br), rows)

    grid_len = pl.cdiv(rows, block_rows_eff)  # partial last block is masked

    # --- Megacore: on v7x shard the row axis across both TensorCores.
    if gen == 7 and grid_len >= 2:
        dim_sem = (pltpu.CORE_PARALLEL,)
    else:
        dim_sem = ("parallel",)

    kernel = _make_kernel(scale_f, compute_dtype)

    out2d = pl.pallas_call(
        kernel,
        out_shape=jax.ShapeDtypeStruct((rows, lane), dtype),
        grid_spec=pltpu.PrefetchScalarGridSpec(
            num_scalar_prefetch=0,
            grid=(grid_len,),
            in_specs=[pl.BlockSpec((block_rows_eff, lane), lambda i: (i, 0))],
            out_specs=pl.BlockSpec((block_rows_eff, lane), lambda i: (i, 0)),
        ),
        compiler_params=pltpu.CompilerParams(
            dimension_semantics=dim_sem,
            vmem_limit_bytes=vmem_limit,
        ),
    )(x2d)

    out_main = out2d.reshape(-1)
    if tail_len:
        tail = x_flat[n_main:]
        tail_out = jnp.maximum(tail.astype(compute_dtype) * scale_f, 0.0).astype(dtype)
        out_flat = jnp.concatenate([out_main, tail_out])
    else:
        out_flat = out_main
    return out_flat.reshape(orig_shape)


if __name__ == "__main__":
    scale = 2.5  # deterministic module __init__ arg

    # 1) Canonical NCHW input (fast path: no tail, lane-dense 2D view).
    x = jax.random.normal(jax.random.PRNGKey(0), (2, 4, 16, 16), dtype=jnp.float32)
    y = scaled_relu(x, scale)
    jax.block_until_ready(y)
    y_ref = jnp.maximum(x * scale, 0.0)
    assert y.shape == x.shape and y.dtype == x.dtype
    assert jnp.allclose(y, y_ref, atol=1e-6), "mismatch vs reference (f32 fast path)"

    # 2) Element count not a multiple of 128 -> aligned-prefix + jnp tail path.
    x2 = jax.random.normal(jax.random.PRNGKey(1), (2, 3, 5, 7), dtype=jnp.float32)
    y2 = scaled_relu(x2, scale)
    jax.block_until_ready(y2)
    assert jnp.allclose(y2, jnp.maximum(x2 * scale, 0.0), atol=1e-6), "mismatch (tail path)"

    # 3) Partial last grid block (cdiv grid, masked writes) via forced small block.
    x3 = jax.random.normal(jax.random.PRNGKey(2), (4, 8, 16, 16), dtype=jnp.float32)
    y3 = scaled_relu(x3, scale, max_lane=128, block_rows=48)
    jax.block_until_ready(y3)
    assert jnp.allclose(y3, jnp.maximum(x3 * scale, 0.0), atol=1e-6), "mismatch (partial block)"

    # 4) bf16 input: native bf16 compute on v6e/v7x, f32 promotion on v5e.
    x4 = jax.random.normal(jax.random.PRNGKey(3), (2, 4, 16, 16), dtype=jnp.bfloat16)
    y4 = scaled_relu(x4, scale)
    jax.block_until_ready(y4)
    y4_ref = jnp.maximum(x4.astype(jnp.float32) * scale, 0.0).astype(jnp.bfloat16)
    assert y4.dtype == jnp.bfloat16
    assert jnp.allclose(
        y4.astype(jnp.float32), y4_ref.astype(jnp.float32), atol=1e-2, rtol=1e-2
    ), "mismatch (bf16 path)"

    print("KERNEL_OK")
</pallas_src>

<mosaic_0001>
module attributes {stable_mosaic.version = 11 : i64} {
  func.func @kernel(%arg0: i32, %arg1: memref<1x2048xf32, #tpu.memory_space<vmem>>, %arg2: memref<1x2048xf32, #tpu.memory_space<vmem>>) attributes {dimension_semantics = [#tpu.dimension_semantics<parallel>], iteration_bounds = array<i64: 1>, scalar_prefetch = 0 : i64, scratch_operands = 0 : i64, tpu.core_type = #tpu.core_type<tc>, window_params = [{transform_indices = @transform_0, window_bounds = array<i64: 1, 2048>}, {transform_indices = @transform_1, window_bounds = array<i64: 1, 2048>}]} {
    %c0 = arith.constant 0 : index
    %c0_0 = arith.constant 0 : index
    %0 = vector.load %arg1[%c0, %c0_0] : memref<1x2048xf32, #tpu.memory_space<vmem>>, vector<1x2048xf32>
    %cst = arith.constant 2.500000e+00 : f32
    %1 = vector.broadcast %cst : f32 to vector<1x2048xf32>
    %2 = arith.mulf %0, %1 : vector<1x2048xf32>
    %cst_1 = arith.constant 0.000000e+00 : f32
    %3 = vector.broadcast %cst_1 : f32 to vector<1x2048xf32>
    %4 = arith.maximumf %2, %3 : vector<1x2048xf32>
    %c0_2 = arith.constant 0 : index
    %c0_3 = arith.constant 0 : index
    %5 = vector.load %arg2[%c0_2, %c0_3] : memref<1x2048xf32, #tpu.memory_space<vmem>>, vector<1x2048xf32>
    tpu.vector_store %arg2[%c0_2, %c0_3], %4 {strides = array<i32>} : memref<1x2048xf32, #tpu.memory_space<vmem>>, vector<1x2048xf32>,
    return
  }
  func.func @transform_0(%arg0: i32) -> (i32, i32) {
    %c0_i32 = arith.constant 0 : i32
    %c0_i32_0 = arith.constant 0 : i32
    return %arg0, %c0_i32 : i32, i32
  }
  func.func @transform_1(%arg0: i32) -> (i32, i32) {
    %c0_i32 = arith.constant 0 : i32
    %c0_i32_0 = arith.constant 0 : i32
    return %arg0, %c0_i32 : i32, i32
  }
}

</mosaic_0001>

<llo_original>
// kernel: scaled_relu.1
$region0: #{scaled_relu.1}
  #allocation0 [shape = 'u32[]', space=smem, size = 0x4, offset = 0x4, fixed_abs, tag = 'smem constant byte address 0x4 - core index']
  #allocation1 [shape = 'u32[144,128]{1,0:T(1,128)}', space=vmem, size = 0x12000, scoped, tag = 'internal scratch']
  %s0 = inlined_call_operand.vmem [shape: f32[1,2048], index: 0, kind: input, shape index: {}]
  %s1 = inlined_call_operand.vmem [shape: f32[1,2048], index: 1, kind: output, shape index: {}]
  %s2 = sld [smem:[#allocation0]]
  $region14: #{scaled_relu.1} parent=0
    _
  %s4 = ssub.s32 1, %s2
  %s5 = scalar_select 0, %s4, %s2
  // Predicated region
  $region2: #{scaled_relu.1} parent=0 // pred_check
    _
  $region3: #{scaled_relu.1} parent=0 // pred_check_branch
    %7 = sbr.rel (0) target = $region5
  $region4: #{scaled_relu.1} parent=0 // pred_region
    _
  $region5: #{scaled_relu.1} parent=0 // pred_fallthru
    _
  %v8 = vld [vmem:[%s0] sm:$0xff]
  %v9 = vld [vmem:[%s0 + $0x8] sm:$0xff]
  %v10 = vmul.f32 %v8, 2.5
  %v11 = vmul.f32 %v9, 2.5
  %v12 = vmax.f32 %v10, 0.0
  %v13 = vmax.f32 %v11, 0.0
  %14 = vst [vmem:[%s1] sm:$0xff] %v12
  %15 = vst [vmem:[%s1 + $0x8] sm:$0xff] %v13
  // Predicated region
  $region6: #{scaled_relu.1} parent=0 // pred_check
    _
  $region7: #{scaled_relu.1} parent=0 // pred_check_branch
    %17 = sbr.rel (0) target = $region9
  $region8: #{scaled_relu.1} parent=0 // pred_region
    _
  $region9: #{scaled_relu.1} parent=0 // pred_fallthru
    _
  // Predicated region
  $region10: #{scaled_relu.1} parent=0 // pred_check
    _
  $region11: #{scaled_relu.1} parent=0 // pred_check_branch
    %19 = sbr.rel (0) target = $region13
  $region12: #{scaled_relu.1} parent=0 // pred_region
    _
  $region13: #{scaled_relu.1} parent=0 // pred_fallthru
    _

</llo_original>
